<compile_context>
chip_gen: v5e
topology: v5e:2x2
jax: 0.10.0
libtpu: 0.0.40
codegen_flags: <defaults>
</compile_context>

<pallas_src>
import functools
import math

import jax
import jax.numpy as jnp
from jax.experimental import pallas as pl
from jax.experimental.pallas import tpu as pltpu

_LANE = 128                      # TPU lane width
_SUBLANE = 8                     # sublane granularity for the row dimension
_TARGET_PACKED_LANES = 1024      # aim for ~1024-lane packed rows (4 KiB f32 / row)
_TARGET_BLOCK_BYTES = 4 << 20    # ~4 MiB per block; 2x buffers fits v5e default scoped VMEM
_MIN_GRID_BLOCKS = 4             # keep >=4 blocks when possible (v7x dual-TC sharding)


def _round_up(x: int, m: int) -> int:
    return (x + m - 1) // m * m


def _cdiv(a: int, b: int) -> int:
    return (a + b - 1) // b


def _rope_packed_kernel(off_ref, freq_ref, posoff_ref, o_ref, *, tile_rows: int, pack: int):
    """Writes one [tile_rows, pack*dim] slab of the packed RoPE angle table.

    Packed layout: packed row R, packed column c corresponds to original
    position s = R*pack + c//dim and frequency index j = c % dim, so
        angle = (s + offset) * scaled_inv_freq[j]
              = (R*pack + offset) * freq_tiled[c] + posoff[c]
    with  freq_tiled[c] = scaled_inv_freq[c % dim]
          posoff[c]     = (c // dim) * scaled_inv_freq[c % dim]
    both precomputed on the host.

    off_ref:    SMEM f32[1]            (runtime offset -> no recompile per offset)
    freq_ref:   VMEM f32[1, pack*dim]
    posoff_ref: VMEM f32[1, pack*dim]
    o_ref:      VMEM f32[tile_rows, pack*dim]
    """
    # Base position of the first row of this tile (float32 positions are exact
    # up to 2^24 ~ 16.7M rows, a hard ceiling inherited from f32 RoPE itself).
    base = (pl.program_id(0) * (tile_rows * pack)).astype(jnp.float32) + off_ref[0]
    rows = jax.lax.broadcasted_iota(jnp.int32, o_ref.shape, 0).astype(jnp.float32)
    pos = rows * jnp.float32(pack) + base
    o_ref[...] = pos * freq_ref[...] + posoff_ref[...]


class RotaryEmbedding:
    """JAX/Pallas port of the PyTorch RotaryEmbedding module."""

    def __init__(self, kv_channel: int, rotary_percent: float,
                 seq_len_interpolation_factor: float = None,
                 rotary_base: float = 10000.0):
        dim = kv_channel
        if rotary_percent < 1.0:
            dim = int(kv_channel * rotary_percent)
        assert dim % 2 == 0, "rotary dim must be even (matches 2*len(inv_freq))"
        self.dim = dim
        self.seq_len_interpolation_factor = seq_len_interpolation_factor
        self.rotary_base = rotary_base

        # inv_freq: f32[dim//2], deterministic (no learned parameters).
        exponents = jnp.arange(0, dim, 2, dtype=jnp.float32) / dim
        self.inv_freq = 1.0 / (rotary_base ** exponents)

        # Host-side prep: duplicate inv_freq to the full per-position row [dim]
        # (the concat in the reference) and fold the interpolation scale in.
        scale = (1.0 / seq_len_interpolation_factor
                 if seq_len_interpolation_factor is not None else 1.0)
        scaled = (self.inv_freq * jnp.float32(scale)).astype(jnp.float32)
        freq_row = jnp.concatenate([scaled, scaled])          # f32[dim]

        # Packing factor: pack*dim is a multiple of 128 lanes, ~1024 lanes wide,
        # so the output slab is lane-dense regardless of dim (e.g. dim=64 -> 1024).
        base_pack = _LANE // math.gcd(dim, _LANE)
        pack = base_pack * max(1, _TARGET_PACKED_LANES // (base_pack * dim))
        self.pack = pack
        self.packed_dim = pack * dim

        tiled = jnp.tile(freq_row, pack)                                     # f32[pack*dim]
        suboff = jnp.repeat(jnp.arange(pack, dtype=jnp.float32), dim)        # f32[pack*dim]
        self._freq_tiled = tiled.reshape(1, self.packed_dim)
        self._pos_off = (suboff * tiled).reshape(1, self.packed_dim)

        self._builders = {}   # S -> jitted build fn (one Mosaic compile per S)
        self._cache = {}      # (S, offset) -> materialized table

    # ------------------------------------------------------------------ #

    def _get_builder(self, S: int):
        fn = self._builders.get(S)
        if fn is not None:
            return fn

        dim, pack, packed_dim = self.dim, self.pack, self.packed_dim
        s_rows = _cdiv(S, pack)                       # packed rows actually needed

        # Tile rows: large (~4 MiB blocks) to amortize per-step overhead, but
        # small enough that the grid has >= _MIN_GRID_BLOCKS blocks when S
        # allows (so "parallel" actually shards across both TCs on v7x).
        row_bytes = packed_dim * 4
        rows_cap = max(_SUBLANE, (_TARGET_BLOCK_BYTES // row_bytes) // _SUBLANE * _SUBLANE)
        rows_split = max(_SUBLANE, _round_up(_cdiv(s_rows, _MIN_GRID_BLOCKS), _SUBLANE))
        ts = min(rows_cap, rows_split)
        grid = (_cdiv(s_rows, ts),)                   # ragged last block is masked by Pallas

        kernel = functools.partial(_rope_packed_kernel, tile_rows=ts, pack=pack)

        def build(offset_f32, freq_tiled, pos_off):
            packed = pl.pallas_call(
                kernel,
                out_shape=jax.ShapeDtypeStruct((s_rows, packed_dim), jnp.float32),
                grid=grid,
                in_specs=[
                    pl.BlockSpec(memory_space=pltpu.MemorySpace.SMEM),   # offset scalar
                    pl.BlockSpec((1, packed_dim), lambda i: (0, 0)),     # freq_tiled
                    pl.BlockSpec((1, packed_dim), lambda i: (0, 0)),     # pos_off
                ],
                out_specs=pl.BlockSpec((ts, packed_dim), lambda i: (i, 0)),
                compiler_params=pltpu.CompilerParams(
                    dimension_semantics=("parallel",)),
            )(offset_f32, freq_tiled, pos_off)
            # [s_rows, pack*dim] row-major is byte-identical to [s_rows*pack, dim]:
            # the reshape is free; only the < pack-row tail is trimmed.
            flat = packed.reshape(s_rows * pack, dim)
            return flat[:S].reshape(S, 1, 1, dim)

        fn = jax.jit(build)
        self._builders[S] = fn
        return fn

    # ------------------------------------------------------------------ #

    def __call__(self, max_seq_len: int, offset: int = 0):
        key = (int(max_seq_len), float(offset))
        cached = self._cache.get(key)
        if cached is not None:
            return cached
        build = self._get_builder(int(max_seq_len))
        offset_arr = jnp.asarray([float(offset)], dtype=jnp.float32)
        emb = jax.block_until_ready(build(offset_arr, self._freq_tiled, self._pos_off))
        self._cache[key] = emb
        return emb


# ---------------------------------------------------------------------- #
# Pure-JAX reference (mirrors the PyTorch forward exactly).
def _reference(inv_freq, max_seq_len, offset=0, interp=None):
    seq = jnp.arange(max_seq_len, dtype=jnp.float32) + offset
    if interp is not None:
        seq = seq * (1.0 / interp)
    freqs = jnp.outer(seq, inv_freq)
    emb = jnp.concatenate([freqs, freqs], axis=-1)
    return emb[:, None, None, :]


if __name__ == "__main__":
    # Deterministic setup (module has no random params; key kept per convention).
    key = jax.random.PRNGKey(0)
    del key

    # Case 1: mirrors the PyTorch spec exactly (S=6, kv_channel=8).
    max_seq_length = 6
    rotary_embedding = RotaryEmbedding(kv_channel=8, rotary_percent=1.0)
    emb = jax.block_until_ready(rotary_embedding(max_seq_length))
    ref = _reference(rotary_embedding.inv_freq, max_seq_length)
    assert emb.shape == (max_seq_length, 1, 1, 8), emb.shape
    assert emb.dtype == jnp.float32
    assert jnp.allclose(emb, ref, atol=1e-6, rtol=1e-6), "mismatch vs reference (case 1)"

    # Case 2: exercises offset + interpolation-factor folding and packed tiling.
    rot2 = RotaryEmbedding(kv_channel=16, rotary_percent=1.0,
                           seq_len_interpolation_factor=2.0)
    S2, off2 = 300, 3
    emb2 = jax.block_until_ready(rot2(S2, offset=off2))
    ref2 = _reference(rot2.inv_freq, S2, offset=off2, interp=2.0)
    assert emb2.shape == (S2, 1, 1, 16), emb2.shape
    assert jnp.allclose(emb2, ref2, atol=1e-5, rtol=1e-5), "mismatch vs reference (case 2)"

    # Same S, different offset: reuses the same compiled kernel (offset is a
    # runtime SMEM scalar, not baked into the Mosaic compile).
    emb3 = jax.block_until_ready(rot2(S2, offset=7))
    ref3 = _reference(rot2.inv_freq, S2, offset=7, interp=2.0)
    assert jnp.allclose(emb3, ref3, atol=1e-5, rtol=1e-5), "mismatch vs reference (case 3)"
    assert len(rot2._builders) == 1, "offset change must not trigger a new compile"

    # Cached second call returns the same object (no recompute).
    assert rot2(S2, offset=off2) is emb2

    print("KERNEL_OK")
</pallas_src>

<mosaic_0001>
module attributes {stable_mosaic.version = 11 : i64} {
  func.func @_rope_packed_kernel(%arg0: i32, %arg1: memref<1xf32, #tpu.memory_space<smem>>, %arg2: memref<1x1024xf32, #tpu.memory_space<vmem>>, %arg3: memref<1x1024xf32, #tpu.memory_space<vmem>>, %arg4: memref<8x1024xf32, #tpu.memory_space<vmem>>) attributes {dimension_semantics = [#tpu.dimension_semantics<parallel>], iteration_bounds = array<i64: 1>, scalar_prefetch = 0 : i64, scratch_operands = 0 : i64, tpu.core_type = #tpu.core_type<tc>, window_params = [{transform_indices = @transform_0, window_bounds = array<i64: 1>}, {pipeline_mode = #tpu.pipeline_mode<synchronous>, transform_indices = @transform_1, window_bounds = array<i64: 1, 1024>}, {pipeline_mode = #tpu.pipeline_mode<synchronous>, transform_indices = @transform_2, window_bounds = array<i64: 1, 1024>}, {transform_indices = @transform_3, window_bounds = array<i64: 8, 1024>}]} {
    %c1024_i32 = arith.constant 1024 : i32
    %0 = arith.muli %arg0, %c1024_i32 : i32
    %1 = arith.sitofp %0 : i32 to f32
    %c0 = arith.constant 0 : index
    %2 = memref.load %arg1[%c0] : memref<1xf32, #tpu.memory_space<smem>>
    %3 = arith.addf %1, %2 : f32
    %4 = tpu.iota {dimensions = array<i32: 0>} : vector<8x1024xi32>
    %5 = arith.sitofp %4 : vector<8x1024xi32> to vector<8x1024xf32>
    %cst = arith.constant 1.280000e+02 : f32
    %6 = vector.broadcast %cst : f32 to vector<8x1024xf32>
    %7 = arith.mulf %5, %6 : vector<8x1024xf32>
    %8 = vector.broadcast %3 : f32 to vector<8x1024xf32>
    %9 = arith.addf %7, %8 : vector<8x1024xf32>
    %c0_0 = arith.constant 0 : index
    %c0_1 = arith.constant 0 : index
    %10 = vector.load %arg2[%c0_0, %c0_1] : memref<1x1024xf32, #tpu.memory_space<vmem>>, vector<1x1024xf32>
    %11 = vector.broadcast %10 : vector<1x1024xf32> to vector<8x1024xf32>
    %12 = arith.mulf %9, %11 : vector<8x1024xf32>
    %c0_2 = arith.constant 0 : index
    %c0_3 = arith.constant 0 : index
    %13 = vector.load %arg3[%c0_2, %c0_3] : memref<1x1024xf32, #tpu.memory_space<vmem>>, vector<1x1024xf32>
    %14 = vector.broadcast %13 : vector<1x1024xf32> to vector<8x1024xf32>
    %15 = arith.addf %12, %14 : vector<8x1024xf32>
    %c0_4 = arith.constant 0 : index
    %c0_5 = arith.constant 0 : index
    %16 = vector.load %arg4[%c0_4, %c0_5] : memref<8x1024xf32, #tpu.memory_space<vmem>>, vector<8x1024xf32>
    tpu.vector_store %arg4[%c0_4, %c0_5], %15 {strides = array<i32>} : memref<8x1024xf32, #tpu.memory_space<vmem>>, vector<8x1024xf32>,
    return
  }
  func.func @transform_0(%arg0: i32) -> i32 {
    %c0_i32 = arith.constant 0 : i32
    %c0_i32_0 = arith.constant 0 : i32
    return %c0_i32 : i32
  }
  func.func @transform_1(%arg0: i32) -> (i32, i32) {
    %c0_i32 = arith.constant 0 : i32
    %c0_i32_0 = arith.constant 0 : i32
    %c0_i32_1 = arith.constant 0 : i32
    return %c0_i32, %c0_i32_0 : i32, i32
  }
  func.func @transform_2(%arg0: i32) -> (i32, i32) {
    %c0_i32 = arith.constant 0 : i32
    %c0_i32_0 = arith.constant 0 : i32
    %c0_i32_1 = arith.constant 0 : i32
    return %c0_i32, %c0_i32_0 : i32, i32
  }
  func.func @transform_3(%arg0: i32) -> (i32, i32) {
    %c0_i32 = arith.constant 0 : i32
    %c0_i32_0 = arith.constant 0 : i32
    return %arg0, %c0_i32 : i32, i32
  }
}

</mosaic_0001>

<llo_original>
// kernel: build.1
$region0: #{build.1}
  #allocation0 [shape = 'u32[]', space=smem, size = 0x4, offset = 0x4, fixed_abs, tag = 'smem constant byte address 0x4 - core index']
  #allocation1 [shape = 'u32[72,128]{1,0:T(1,128)}', space=vmem, size = 0x9000, scoped, tag = 'internal scratch']
  #allocation2 [shape = 'f32[1]{0:T(128)S(6)}', space=smem, size = 0x200, scoped, tag = 'scoped memory for build.1']
  %s0 = inlined_call_operand.<no memory space> [shape: f32[1], index: 0, kind: input, shape index: {}]
  %s1 = inlined_call_operand.hbm [shape: f32[1,1024], index: 1, kind: input, shape index: {}]
  %s2 = inlined_call_operand.hbm [shape: f32[1,1024], index: 2, kind: input, shape index: {}]
  %s3 = inlined_call_operand.vmem [shape: f32[1,1024], index: 3, kind: output, shape index: {}]
  %s4 = sld [smem:[#allocation0]]
  $region64: #{build.1} parent=0
    _
  %s6 = ssub.s32 1, %s4
  %s7 = scalar_select 0, %s6, %s4
  %8 = sst [smem:[#allocation2]] %s0
  $region1: #{build.1} parent=0
    #allocation3 [shape = 'u8[4096]{0}', space=vmem, size = 0x1000, scoped, tag = 'input window, operand 1, single buffered']
    #allocation4 [shape = 's32[1]{0}', space=sflag, size = 0x4, scoped, tag = 'scoped memory for build.1']
    #allocation5 [shape = 'u8[4096]{0}', space=vmem, size = 0x1000, scoped, tag = 'input window, operand 2, single buffered']
    #allocation6 [shape = 's32[1]{0}', space=sflag, size = 0x4, scoped, tag = 'scoped memory for build.1']
    #allocation7 [shape = 'u8[32768]{0}', space=vmem, size = 0x8000, scoped, tag = 'output window, operand 0, single buffered']
    %9 = vsyncpa [#allocation4], 0
    %10 = vsyncpa [#allocation6], 0
    // Predicated region
    $region2: #{build.1} parent=1 // pred_check
      _
    $region3: #{build.1} parent=1 // pred_check_branch
      %12 = sbr.rel (0) target = $region5
    $region4: #{build.1} parent=1 // pred_region
      _
    $region5: #{build.1} parent=1 // pred_fallthru
      _
    // Predicated region
    $region6: #{build.1} parent=1 // pred_check
      _
    $region7: #{build.1} parent=1 // pred_check_branch
      %14 = sbr.rel (0) target = $region9
    $region8: #{build.1} parent=1 // pred_region
      %16 = vsyncadd [#allocation4], 0
      %s18 = sshll.u32 %s1, 4
      %s19 = int_to_ptr.hbm [resolvable:$true] %s18
      %s20 = sshll.u32 [#allocation3], 4
      %s21 = int_to_ptr.vmem [resolvable:$true] %s20
      %23 = dma.hbm_to_vmem [thread:$0]  %s19, 128, %s21, [#allocation4]
    $region9: #{build.1} parent=1 // pred_fallthru
      _
    // Predicated region
    $region10: #{build.1} parent=1 // pred_check
      _
    $region11: #{build.1} parent=1 // pred_check_branch
      %25 = sbr.rel (0) target = $region13
    $region12: #{build.1} parent=1 // pred_region
      %27 = vsyncadd [#allocation6], 0
      %s29 = sshll.u32 %s2, 4
      %s30 = int_to_ptr.hbm [resolvable:$true] %s29
      %s31 = sshll.u32 [#allocation5], 4
      %s32 = int_to_ptr.vmem [resolvable:$true] %s31
      %34 = dma.hbm_to_vmem [thread:$0]  %s30, 128, %s32, [#allocation6]
    $region13: #{build.1} parent=1 // pred_fallthru
      _
    // Predicated region
    $region14: #{build.1} parent=1 // pred_check
      _
    $region15: #{build.1} parent=1 // pred_check_branch
      %36 = sbr.rel (0) target = $region17
    $region16: #{build.1} parent=1 // pred_region
      %38 = dma.done [#allocation4], 128
    $region17: #{build.1} parent=1 // pred_fallthru
      _
    // Predicated region
    $region18: #{build.1} parent=1 // pred_check
      _
    $region19: #{build.1} parent=1 // pred_check_branch
      %40 = sbr.rel (0) target = $region21
    $region20: #{build.1} parent=1 // pred_region
      %42 = dma.done [#allocation6], 128
    $region21: #{build.1} parent=1 // pred_fallthru
      _
    %s43 = smul.u32 0, 1024
    %s44 = scvt.s32.f32 %s43
    %s45 = sld [smem:[#allocation2]]
    %s46 = sadd.f32 %s44, %s45
    %v47 = vlaneseq
    %v48 = vshrl.u32 %v47, 7
    %v49 = vcvt.s32.f32 %v48
    %v50 = vmul.f32 %v49, 128.0
    %v51 = vstv %s46
    %v52 = vadd.f32 %v50, %v51
    %v53 = vld [vmem:[#allocation3] sm:$0xff]
    %v55 = vperm.slane %v53, 0
    %v56 = vperm.slane %v53, 1
    %v57 = vperm.slane %v53, 2
    %v58 = vperm.slane %v53, 3
    %v59 = vperm.slane %v53, 4
    %v60 = vperm.slane %v53, 5
    %v61 = vperm.slane %v53, 6
    %v62 = vperm.slane %v53, 7
    %v71 = vmul.f32 %v52, %v55
    %v72 = vmul.f32 %v52, %v56
    %v73 = vmul.f32 %v52, %v57
    %v74 = vmul.f32 %v52, %v58
    %v75 = vmul.f32 %v52, %v59
    %v76 = vmul.f32 %v52, %v60
    %v77 = vmul.f32 %v52, %v61
    %v78 = vmul.f32 %v52, %v62
    %v79 = vld [vmem:[#allocation5] sm:$0xff]
    %v81 = vperm.slane %v79, 0
    %v82 = vperm.slane %v79, 1
    %v83 = vperm.slane %v79, 2
    %v84 = vperm.slane %v79, 3
    %v85 = vperm.slane %v79, 4
    %v86 = vperm.slane %v79, 5
    %v87 = vperm.slane %v79, 6
    %v88 = vperm.slane %v79, 7
    %v97 = vadd.f32 %v71, %v81
    %v98 = vadd.f32 %v72, %v82
    %v99 = vadd.f32 %v73, %v83
    %v100 = vadd.f32 %v74, %v84
    %v101 = vadd.f32 %v75, %v85
    %v102 = vadd.f32 %v76, %v86
    %v103 = vadd.f32 %v77, %v87
    %v104 = vadd.f32 %v78, %v88
    %v113 = vrot.slane %v98, 7
    %v114 = vrot.slane %v99, 6
    %v115 = vrot.slane %v100, 5
    %v116 = vrot.slane %v101, 4
    %v117 = vrot.slane %v102, 3
    %v118 = vrot.slane %v103, 2
    %v119 = vrot.slane %v104, 1
    %vm120 = vcmask 1040384
    %v121 = vsel %vm120, %v97, %v113
    %vm122 = vcmask 1042434
    %v123 = vsel %vm122, %v114, %v115
    %vm124 = vcmask 1041408
    %v125 = vsel %vm124, %v121, %v123
    %vm126 = vcmask 1044484
    %v127 = vsel %vm126, %v116, %v117
    %vm128 = vcmask 1046534
    %v129 = vsel %vm128, %v118, %v119
    %vm130 = vcmask 1045508
    %v131 = vsel %vm130, %v127, %v129
    %vm132 = vcmask 1043456
    %v133 = vsel %vm132, %v125, %v131
    %vm134 = vcmask 1041409
    %v135 = vsel %vm134, %v97, %v113
    %vm136 = vcmask 1043459
    %v137 = vsel %vm136, %v114, %v115
    %vm138 = vcmask 1042433
    %v139 = vsel %vm138, %v135, %v137
    %vm140 = vcmask 1045509
    %v141 = vsel %vm140, %v116, %v117
    %vm142 = vcmask 1046528
    %v143 = vsel %vm142, %v119, %v118
    %vm144 = vcmask 1046533
    %v145 = vsel %vm144, %v141, %v143
    %vm146 = vcmask 1044481
    %v147 = vsel %vm146, %v139, %v145
    %v148 = vrot.slane %v147, 1
    %v149 = vsel %vm122, %v97, %v113
    %v150 = vsel %vm126, %v114, %v115
    %vm151 = vcmask 1043458
    %v152 = vsel %vm151, %v149, %v150
    %v153 = vsel %vm128, %v116, %v117
    %v154 = vsel %vm120, %v118, %v119
    %vm155 = vcmask 1045504
    %v156 = vsel %vm155, %v154, %v153
    %vm157 = vcmask 1045506
    %v158 = vsel %vm157, %v152, %v156
    %v159 = vrot.slane %v158, 2
    %v160 = vsel %vm136, %v97, %v113
    %v161 = vsel %vm140, %v114, %v115
    %vm162 = vcmask 1044483
    %v163 = vsel %vm162, %v160, %v161
    %v164 = vsel %vm142, %v117, %v116
    %v165 = vsel %vm134, %v118, %v119
    %vm166 = vcmask 1046529
    %v167 = vsel %vm166, %v165, %v164
    %vm168 = vcmask 1046531
    %v169 = vsel %vm168, %v163, %v167
    %v170 = vrot.slane %v169, 3
    %v171 = vsel %vm126, %v97, %v113
    %v172 = vsel %vm128, %v114, %v115
    %v173 = vsel %vm130, %v171, %v172
    %v174 = vsel %vm120, %v116, %v117
    %v175 = vsel %vm122, %v118, %v119
    %v176 = vsel %vm124, %v174, %v175
    %v177 = vsel %vm132, %v176, %v173
    %v178 = vrot.slane %v177, 4
    %v179 = vsel %vm140, %v97, %v113
    %v180 = vsel %vm142, %v115, %v114
    %v181 = vsel %vm144, %v179, %v180
    %v182 = vsel %vm134, %v116, %v117
    %v183 = vsel %vm136, %v118, %v119
    %v184 = vsel %vm138, %v182, %v183
    %v185 = vsel %vm146, %v184, %v181
    %v186 = vrot.slane %v185, 5
    %v187 = vsel %vm128, %v97, %v113
    %v188 = vsel %vm120, %v114, %v115
    %v189 = vsel %vm155, %v188, %v187
    %v190 = vsel %vm122, %v116, %v117
    %v191 = vsel %vm126, %v118, %v119
    %v192 = vsel %vm151, %v190, %v191
    %v193 = vsel %vm157, %v192, %v189
    %v194 = vrot.slane %v193, 6
    %v195 = vsel %vm142, %v113, %v97
    %v196 = vsel %vm134, %v114, %v115
    %v197 = vsel %vm166, %v196, %v195
    %v198 = vsel %vm136, %v116, %v117
    %v199 = vsel %vm140, %v118, %v119
    %v200 = vsel %vm162, %v198, %v199
    %v201 = vsel %vm168, %v200, %v197
    %v202 = vrot.slane %v201, 7
    %211 = vst [vmem:[#allocation7] sm:$0xff] %v133
    %212 = vst [vmem:[#allocation7 + $0x8] sm:$0xff] %v148
    %213 = vst [vmem:[#allocation7 + $0x10] sm:$0xff] %v159
    %214 = vst [vmem:[#allocation7 + $0x18] sm:$0xff] %v170
    %215 = vst [vmem:[#allocation7 + $0x20] sm:$0xff] %v178
    %216 = vst [vmem:[#allocation7 + $0x28] sm:$0xff] %v186
    %217 = vst [vmem:[#allocation7 + $0x30] sm:$0xff] %v194
    %218 = vst [vmem:[#allocation7 + $0x38] sm:$0xff] %v202
    // Predicated region
    $region22: #{build.1} parent=1 // pred_check
      _
    $region23: #{build.1} parent=1 // pred_check_branch
      %220 = sbr.rel (0) target = $region25
    $region24: #{build.1} parent=1 // pred_region
      // Predicated region
      $region26: #{build.1} parent=24 // pred_check
        _
      $region27: #{build.1} parent=24 // pred_check_branch
        %222 = sbr.rel (0) target = $region29
      $region28: #{build.1} parent=24 // pred_region
        // Predicated region
        $region30: #{build.1} parent=28 // pred_check
          _
        $region31: #{build.1} parent=28 // pred_check_branch
          %224 = sbr.rel (0) target = $region33
        $region32: #{build.1} parent=28 // pred_region
          // Predicated region
          $region45: #{build.1} parent=32 // pred_check
            _
          $region46: #{build.1} parent=32 // pred_check_branch
            %240 = sbr.rel (0) target = $region48
          $region47: #{build.1} parent=32 // pred_region
            loop: start=0, step=1, limit=1
            $region49: #{build.1} parent=47 // loop_pre_header
              _
            $region50: #{build.1} parent=47 // loop_header
              %s242 = sphi 0, %s246
              %p243 = scmp.ge.s32.totalorder %s242, 1
              %s247 = sphi [#allocation7], [#allocation7]
              %s248 = sphi %s3, %s3
            $region51: #{build.1} parent=47 // loop_header_branch
              %245 = sbr.rel (%p243) target = $region55
            $region52: #{build.1} parent=47 // loop_body
              %v249 = vld [vmem:[%s247] sm:$0xff]
              %250 = vst [vmem:[%s248] sm:$0xff] %v249
            $region53: #{build.1} parent=47 // loop_footer
              %s246 = sadd.s32 1, %s242
            $region54: #{build.1} parent=47 // loop_footer_branch
              %241 = sbr.rel target = $region50
            $region55: #{build.1} parent=47 // loop_exit
              _
          $region48: #{build.1} parent=32 // pred_fallthru
            _
          // Predicated region
          $region56: #{build.1} parent=32 // pred_check
            _
          $region57: #{build.1} parent=32 // pred_check_branch
            %252 = sbr.rel target = $region59
          $region58: #{build.1} parent=32 // pred_region
            _
          $region59: #{build.1} parent=32 // pred_fallthru
            _
        $region33: #{build.1} parent=28 // pred_fallthru
          _
        // Predicated region
        $region34: #{build.1} parent=28 // pred_check
          _
        $region35: #{build.1} parent=28 // pred_check_branch
          %226 = sbr.rel target = $region37
        $region36: #{build.1} parent=28 // pred_region
          %s228 = ssub.s32 256, 1
          loop: start=0, step=1, limit=1
          $region38: #{build.1} parent=36 // loop_pre_header
            _
          $region39: #{build.1} parent=36 // loop_header
            %s230 = sphi 0, %s234
            %p231 = scmp.ge.s32.totalorder %s230, 1
            %s235 = sphi [#allocation7], [#allocation7]
            %s236 = sphi %s3, %s3
          $region40: #{build.1} parent=36 // loop_header_branch
            %233 = sbr.rel (%p231) target = $region44
          $region41: #{build.1} parent=36 // loop_body
            %v237 = vld [vmem:[%s235] sm:%s228]
            %238 = vst [vmem:[%s236] sm:%s228] %v237
          $region42: #{build.1} parent=36 // loop_footer
            %s234 = sadd.s32 1, %s230
          $region43: #{build.1} parent=36 // loop_footer_branch
            %229 = sbr.rel target = $region39
          $region44: #{build.1} parent=36 // loop_exit
            _
        $region37: #{build.1} parent=28 // pred_fallthru
          _
      $region29: #{build.1} parent=24 // pred_fallthru
        _
      %253 = vnop
    $region25: #{build.1} parent=1 // pred_fallthru
      _
    // Predicated region
    $region60: #{build.1} parent=1 // pred_check
      _
    $region61: #{build.1} parent=1 // pred_check_branch
      %255 = sbr.rel (0) target = $region63
    $region62: #{build.1} parent=1 // pred_region
      _
    $region63: #{build.1} parent=1 // pred_fallthru
      _
    %256 = vsyncpa [#allocation4], 1
    %257 = vsyncpa [#allocation6], 1

</llo_original>
